<compile_context>
chip_gen: v5e
topology: v5e:2x2
jax: 0.10.0
libtpu: 0.0.40
codegen_flags: <defaults>
</compile_context>

<pallas_src>
import jax
import jax.numpy as jnp
from jax.experimental import pallas as pl
from jax.experimental.pallas import tpu as pltpu


# ----------------------------- kernels --------------------------------------


def _fused_kernel(x_ref, w_in_ref, b_in_ref, w_out_ref, b_out_ref, o_ref):
    # x_ref:     (tm, d_in_p)
    # w_in_ref:  (d_in_p, d_out_p)   b_in_ref:  (1, d_out_p)
    # w_out_ref: (d_out_p, d_in_p)   b_out_ref: (1, d_in_p)
    # o_ref:     (tm, d_in_p)
    # project_in: MXU matmul at native operand dtype, f32 accumulate.
    h = jnp.dot(x_ref[...], w_in_ref[...], preferred_element_type=jnp.float32)
    h = h + b_in_ref[...].astype(jnp.float32)
    # fn stand-in: tanh-form GELU (tanh runs on the EUP, its own VLIW slot).
    h = jax.nn.gelu(h, approximate=True)
    # project_out: keep weight dtype on the MXU (bf16 stays bf16).
    y = jnp.dot(h.astype(w_out_ref.dtype), w_out_ref[...],
                preferred_element_type=jnp.float32)
    o_ref[...] = (y + b_out_ref[...].astype(jnp.float32)).astype(o_ref.dtype)


def _dtiled_kernel(x_ref, w_in_ref, b_in_ref, w_out_ref, b_out_ref, o_ref,
                   acc_ref):
    # Fallback for weight pairs too big to sit resident in VMEM (v7x 64 MiB):
    # grid = (row tiles, d_out chunks); matmul-2 accumulates into f32 scratch.
    # x_ref: (tm, d_in_p)      w_in_ref: (d_in_p, tk)   b_in_ref: (1, tk)
    # w_out_ref: (tk, d_in_p)  b_out_ref: (1, d_in_p)   o/acc: (tm, d_in_p)
    k = pl.program_id(1)

    @pl.when(k == 0)
    def _():
        acc_ref[...] = jnp.zeros_like(acc_ref)

    h = jnp.dot(x_ref[...], w_in_ref[...], preferred_element_type=jnp.float32)
    h = h + b_in_ref[...].astype(jnp.float32)
    h = jax.nn.gelu(h, approximate=True)
    acc_ref[...] += jnp.dot(h.astype(w_out_ref.dtype), w_out_ref[...],
                            preferred_element_type=jnp.float32)

    @pl.when(k == pl.num_programs(1) - 1)
    def _():
        o_ref[...] = (acc_ref[...] + b_out_ref[...].astype(jnp.float32)
                      ).astype(o_ref.dtype)


# --------------------------- tiling policy -----------------------------------


def _round_up(x, m):
    return ((x + m - 1) // m) * m


def _vmem_capacity_bytes():
    """Physical VMEM per core; conservative 64 MiB (v7x) fallback."""
    try:
        cap = int(pltpu.get_tpu_info().vmem_capacity_bytes)
        if cap > 0:
            return cap
    except Exception:
        pass
    return 64 * 1024 * 1024


def _fused_footprint(tm, d_in_p, d_out_p, x_bytes, w_bytes):
    acts = 2 * tm * d_in_p * x_bytes * 2                     # x + out, 2 bufs each
    weights = 2 * (2 * d_in_p * d_out_p + d_in_p + d_out_p) * w_bytes  # 2 bufs
    interm = tm * d_out_p * 4 + tm * d_in_p * 4              # f32 h and y slabs
    return acts + weights + interm


def _dtiled_footprint(tm, tk, d_in_p, x_bytes, w_bytes):
    acts = 2 * tm * d_in_p * x_bytes * 2                     # x + out, 2 bufs each
    weights = 2 * (d_in_p * tk + tk * d_in_p + tk + d_in_p) * w_bytes
    interm = tm * tk * 4 + tm * d_in_p * 4                   # f32 h + acc scratch
    return acts + weights + interm


def _derive_fused_tm(m_rows, d_in_p, d_out_p, x_bytes, w_bytes, budget):
    tm = 1024
    while tm > 128 and _fused_footprint(tm, d_in_p, d_out_p,
                                        x_bytes, w_bytes) > budget:
        tm -= 128
    tm = min(tm, _round_up(max(m_rows, 1), 128))
    # Keep >= 2 balanced grid steps when possible so v7x's 2 TensorCores are
    # both busy on the 'parallel' row axis (no measurable cost on 1-TC chips).
    if m_rows > 128:
        tm = min(tm, _round_up(pl.cdiv(m_rows, 2), 128))
    return max(tm, 128)


def _derive_dtiled(m_rows, d_in_p, d_out_p, x_bytes, w_bytes, budget):
    tm = 256 if m_rows > 128 else 128
    if m_rows > 128:
        tm = min(tm, _round_up(pl.cdiv(m_rows, 2), 128))
    tm = max(min(tm, _round_up(max(m_rows, 1), 128)), 128)
    tk = min(d_out_p, 2048)
    while tk > 128 and _dtiled_footprint(tm, tk, d_in_p, x_bytes, w_bytes) > budget:
        tk -= 128
    while tm > 128 and _dtiled_footprint(tm, tk, d_in_p, x_bytes, w_bytes) > budget:
        tm -= 128
    return tm, tk


# ------------------------------ wrapper ---------------------------------------


def project_in_out(x, w_in, b_in, w_out, b_out, *, tm=None, tk=None,
                   compute_dtype=None, force_d_tiling=False):
    """x: (B, N, dim_in). w_in: (dim_in, dim_out), w_out: (dim_out, dim_in)
    (pre-transposed vs PyTorch). Returns (B, N, dim_in) in x's dtype.

    compute_dtype: e.g. jnp.bfloat16 — one-time cast of x / W_in / W_out so
    the MXU runs at bf16 rate; accumulation and epilogue stay f32."""
    orig_dtype = x.dtype
    B, N, dim_in = x.shape
    dim_out = w_in.shape[1]
    M = B * N

    if compute_dtype is not None:
        x = x.astype(compute_dtype)
        w_in = w_in.astype(compute_dtype)
        w_out = w_out.astype(compute_dtype)

    # Lane-dense padding of the channel dims (multiples of 128).
    d_in_p = _round_up(dim_in, 128)
    d_out_p = _round_up(dim_out, 128)
    x_bytes = x.dtype.itemsize
    w_bytes = w_in.dtype.itemsize

    # Generation-aware VMEM policy (~96 MiB on v5e/v6e, ~48 MiB on v7x).
    vmem_limit = int(_vmem_capacity_bytes() * 3 // 4)
    budget = vmem_limit - 4 * 1024 * 1024        # headroom for compiler scratch

    use_dtiled = force_d_tiling or (
        _fused_footprint(128, d_in_p, d_out_p, x_bytes, w_bytes) > budget)

    if use_dtiled:
        tm_auto, tk_auto = _derive_dtiled(M, d_in_p, d_out_p, x_bytes, w_bytes,
                                          budget)
        tm = tm_auto if tm is None else tm
        tk = tk_auto if tk is None else tk
        # Re-pad d_out so tk divides it exactly (zero pad is mathematically
        # exact: gelu(0) == 0 and zero weight rows/cols contribute nothing).
        d_out_p = _round_up(d_out_p, tk)
        grid_k = d_out_p // tk
    else:
        if tm is None:
            tm = _derive_fused_tm(M, d_in_p, d_out_p, x_bytes, w_bytes, budget)

    grid_m = pl.cdiv(M, tm)
    m_pad = grid_m * tm

    # --- activations: fast path skips pad/unpad when shapes are already tiled
    x2 = x.reshape(M, dim_in)
    ragged = (m_pad != M) or (d_in_p != dim_in)
    if ragged:
        x2 = jnp.zeros((m_pad, d_in_p), x.dtype).at[:M, :dim_in].set(x2)

    # --- weights / biases: padding is cheap relative to activations
    w_in_p = jnp.zeros((d_in_p, d_out_p), w_in.dtype).at[:dim_in, :dim_out].set(w_in)
    b_in_p = jnp.zeros((1, d_out_p), b_in.dtype).at[0, :dim_out].set(b_in)
    w_out_p = jnp.zeros((d_out_p, d_in_p), w_out.dtype).at[:dim_out, :dim_in].set(w_out)
    b_out_p = jnp.zeros((1, d_in_p), b_out.dtype).at[0, :dim_in].set(b_out)

    cost = pl.CostEstimate(
        flops=2 * 2 * m_pad * d_in_p * d_out_p,              # two matmuls
        transcendentals=m_pad * d_out_p,                     # tanh in GELU
        bytes_accessed=(2 * m_pad * d_in_p * x_bytes
                        + 2 * d_in_p * d_out_p * w_bytes
                        + (d_in_p + d_out_p) * w_bytes),
    )
    cparams_1d = pltpu.CompilerParams(
        dimension_semantics=("parallel",), vmem_limit_bytes=vmem_limit)
    cparams_2d = pltpu.CompilerParams(
        dimension_semantics=("parallel", "arbitrary"),
        vmem_limit_bytes=vmem_limit)

    if not use_dtiled:
        # Resident weights (constant index_map -> DMA'd once, no re-fetch).
        out = pl.pallas_call(
            _fused_kernel,
            out_shape=jax.ShapeDtypeStruct((m_pad, d_in_p), orig_dtype),
            grid_spec=pltpu.PrefetchScalarGridSpec(
                num_scalar_prefetch=0,
                grid=(grid_m,),
                in_specs=[
                    pl.BlockSpec((tm, d_in_p), lambda i: (i, 0)),        # x rows
                    pl.BlockSpec((d_in_p, d_out_p), lambda i: (0, 0)),   # W_in
                    pl.BlockSpec((1, d_out_p), lambda i: (0, 0)),        # b_in
                    pl.BlockSpec((d_out_p, d_in_p), lambda i: (0, 0)),   # W_out
                    pl.BlockSpec((1, d_in_p), lambda i: (0, 0)),         # b_out
                ],
                out_specs=pl.BlockSpec((tm, d_in_p), lambda i: (i, 0)),
            ),
            compiler_params=cparams_1d,
            cost_estimate=cost,
        )(x2, w_in_p, b_in_p, w_out_p, b_out_p)
    else:
        out = pl.pallas_call(
            _dtiled_kernel,
            out_shape=jax.ShapeDtypeStruct((m_pad, d_in_p), orig_dtype),
            grid_spec=pltpu.PrefetchScalarGridSpec(
                num_scalar_prefetch=0,
                grid=(grid_m, grid_k),
                in_specs=[
                    pl.BlockSpec((tm, d_in_p), lambda i, k: (i, 0)),     # x rows
                    pl.BlockSpec((d_in_p, tk), lambda i, k: (0, k)),     # W_in chunk
                    pl.BlockSpec((1, tk), lambda i, k: (0, k)),          # b_in chunk
                    pl.BlockSpec((tk, d_in_p), lambda i, k: (k, 0)),     # W_out chunk
                    pl.BlockSpec((1, d_in_p), lambda i, k: (0, 0)),      # b_out
                ],
                out_specs=pl.BlockSpec((tm, d_in_p), lambda i, k: (i, 0)),
                scratch_shapes=[pltpu.VMEM((tm, d_in_p), jnp.float32)],
            ),
            compiler_params=cparams_2d,
            cost_estimate=cost,
        )(x2, w_in_p, b_in_p, w_out_p, b_out_p)

    if ragged:
        out = out[:M, :dim_in]
    return out.reshape(B, N, dim_in)


# ------------------------------ reference -------------------------------------


def _reference(x, w_in, b_in, w_out, b_out):
    h = jnp.einsum("bnd,de->bne", x.astype(jnp.float32),
                   w_in.astype(jnp.float32)) + b_in.astype(jnp.float32)
    h = jax.nn.gelu(h, approximate=True)
    y = jnp.einsum("bne,ed->bnd", h, w_out.astype(jnp.float32)) \
        + b_out.astype(jnp.float32)
    return y.astype(x.dtype)


if __name__ == "__main__":
    key = jax.random.PRNGKey(0)

    def make_inputs(k, B, N, dim_in, dim_out):
        kx, kwi, kbi, kwo, kbo = jax.random.split(k, 5)
        x = jax.random.normal(kx, (B, N, dim_in), dtype=jnp.float32)
        s_in = 1.0 / jnp.sqrt(dim_in)
        s_out = 1.0 / jnp.sqrt(dim_out)
        w_in = jax.random.uniform(kwi, (dim_in, dim_out), jnp.float32, -s_in, s_in)
        b_in = jax.random.uniform(kbi, (dim_out,), jnp.float32, -s_in, s_in)
        w_out = jax.random.uniform(kwo, (dim_out, dim_in), jnp.float32, -s_out, s_out)
        b_out = jax.random.uniform(kbo, (dim_in,), jnp.float32, -s_out, s_out)
        return x, w_in, b_in, w_out, b_out

    # 1) Fused resident-weight path, f32 (dim_in != dim_out -> Linear branch).
    x, w_in, b_in, w_out, b_out = make_inputs(key, 2, 8, 32, 64)
    y = jax.block_until_ready(project_in_out(x, w_in, b_in, w_out, b_out))
    y_ref = _reference(x, w_in, b_in, w_out, b_out)
    assert y.shape == (2, 8, 32)
    assert jnp.allclose(y, y_ref, atol=1e-3, rtol=1e-3), "fused path mismatch"

    # 2) d_out-tiled accumulator path (forced; exercises the v7x weight fallback).
    k2 = jax.random.fold_in(key, 1)
    x2, w_in2, b_in2, w_out2, b_out2 = make_inputs(k2, 2, 8, 32, 192)
    y2 = jax.block_until_ready(
        project_in_out(x2, w_in2, b_in2, w_out2, b_out2,
                       force_d_tiling=True, tk=128))
    y2_ref = _reference(x2, w_in2, b_in2, w_out2, b_out2)
    assert jnp.allclose(y2, y2_ref, atol=1e-3, rtol=1e-3), "d-tiled path mismatch"

    # 3) bf16-operand path (MXU-rate operands, f32 accumulate), looser tolerance.
    y3 = jax.block_until_ready(
        project_in_out(x, w_in, b_in, w_out, b_out, compute_dtype=jnp.bfloat16))
    assert y3.dtype == x.dtype
    assert jnp.allclose(y3, y_ref, atol=5e-2, rtol=5e-2), "bf16 path mismatch"

    print("KERNEL_OK")
</pallas_src>

<mosaic_0001>
module attributes {stable_mosaic.version = 11 : i64} {
  func.func @_fused_kernel(%arg0: i32, %arg1: memref<128x128xf32, #tpu.memory_space<vmem>>, %arg2: memref<128x128xf32, #tpu.memory_space<vmem>>, %arg3: memref<1x128xf32, #tpu.memory_space<vmem>>, %arg4: memref<128x128xf32, #tpu.memory_space<vmem>>, %arg5: memref<1x128xf32, #tpu.memory_space<vmem>>, %arg6: memref<128x128xf32, #tpu.memory_space<vmem>>) attributes {dimension_semantics = [#tpu.dimension_semantics<parallel>], iteration_bounds = array<i64: 1>, scalar_prefetch = 0 : i64, scratch_operands = 0 : i64, tpu.core_type = #tpu.core_type<tc>, window_params = [{transform_indices = @transform_0, window_bounds = array<i64: 128, 128>}, {pipeline_mode = #tpu.pipeline_mode<synchronous>, transform_indices = @transform_1, window_bounds = array<i64: 128, 128>}, {pipeline_mode = #tpu.pipeline_mode<synchronous>, transform_indices = @transform_2, window_bounds = array<i64: 1, 128>}, {pipeline_mode = #tpu.pipeline_mode<synchronous>, transform_indices = @transform_3, window_bounds = array<i64: 128, 128>}, {pipeline_mode = #tpu.pipeline_mode<synchronous>, transform_indices = @transform_4, window_bounds = array<i64: 1, 128>}, {transform_indices = @transform_5, window_bounds = array<i64: 128, 128>}]} {
    %c0 = arith.constant 0 : index
    %c0_0 = arith.constant 0 : index
    %0 = vector.load %arg1[%c0, %c0_0] : memref<128x128xf32, #tpu.memory_space<vmem>>, vector<128x128xf32>
    %c0_1 = arith.constant 0 : index
    %c0_2 = arith.constant 0 : index
    %1 = vector.load %arg2[%c0_1, %c0_2] : memref<128x128xf32, #tpu.memory_space<vmem>>, vector<128x128xf32>
    %cst = arith.constant dense<0.000000e+00> : vector<128x128xf32>
    %2 = tpu.matmul %0, %1, %cst {dimension_numbers = #tpu.dot_dimension_numbers<[1], [0], [0], [1], [0, 0, 1, 1], [], []>} : vector<128x128xf32>, vector<128x128xf32>, vector<128x128xf32> -> vector<128x128xf32>
    %c0_3 = arith.constant 0 : index
    %c0_4 = arith.constant 0 : index
    %3 = vector.load %arg3[%c0_3, %c0_4] : memref<1x128xf32, #tpu.memory_space<vmem>>, vector<1x128xf32>
    %4 = vector.broadcast %3 : vector<1x128xf32> to vector<128x128xf32>
    %5 = arith.addf %2, %4 : vector<128x128xf32>
    %6 = arith.mulf %5, %5 : vector<128x128xf32>
    %7 = arith.mulf %5, %6 : vector<128x128xf32>
    %cst_5 = arith.constant 4.471500e-02 : f32
    %8 = vector.broadcast %cst_5 : f32 to vector<128x128xf32>
    %9 = arith.mulf %8, %7 : vector<128x128xf32>
    %10 = arith.addf %5, %9 : vector<128x128xf32>
    %cst_6 = arith.constant 0.797884583 : f32
    %11 = vector.broadcast %cst_6 : f32 to vector<128x128xf32>
    %12 = arith.mulf %11, %10 : vector<128x128xf32>
    %13 = math.tanh %12 : vector<128x128xf32>
    %cst_7 = arith.constant 1.000000e+00 : f32
    %14 = vector.broadcast %cst_7 : f32 to vector<128x128xf32>
    %15 = arith.addf %14, %13 : vector<128x128xf32>
    %cst_8 = arith.constant 5.000000e-01 : f32
    %16 = vector.broadcast %cst_8 : f32 to vector<128x128xf32>
    %17 = arith.mulf %16, %15 : vector<128x128xf32>
    %18 = arith.mulf %5, %17 : vector<128x128xf32>
    %c0_9 = arith.constant 0 : index
    %c0_10 = arith.constant 0 : index
    %19 = vector.load %arg4[%c0_9, %c0_10] : memref<128x128xf32, #tpu.memory_space<vmem>>, vector<128x128xf32>
    %cst_11 = arith.constant dense<0.000000e+00> : vector<128x128xf32>
    %20 = tpu.matmul %18, %19, %cst_11 {dimension_numbers = #tpu.dot_dimension_numbers<[1], [0], [0], [1], [0, 0, 1, 1], [], []>} : vector<128x128xf32>, vector<128x128xf32>, vector<128x128xf32> -> vector<128x128xf32>
    %c0_12 = arith.constant 0 : index
    %c0_13 = arith.constant 0 : index
    %21 = vector.load %arg5[%c0_12, %c0_13] : memref<1x128xf32, #tpu.memory_space<vmem>>, vector<1x128xf32>
    %22 = vector.broadcast %21 : vector<1x128xf32> to vector<128x128xf32>
    %23 = arith.addf %20, %22 : vector<128x128xf32>
    %c0_14 = arith.constant 0 : index
    %c0_15 = arith.constant 0 : index
    %24 = vector.load %arg6[%c0_14, %c0_15] : memref<128x128xf32, #tpu.memory_space<vmem>>, vector<128x128xf32>
    tpu.vector_store %arg6[%c0_14, %c0_15], %23 {strides = array<i32>} : memref<128x128xf32, #tpu.memory_space<vmem>>, vector<128x128xf32>,
    return
  }
  func.func @transform_0(%arg0: i32) -> (i32, i32) {
    %c0_i32 = arith.constant 0 : i32
    %c0_i32_0 = arith.constant 0 : i32
    return %arg0, %c0_i32 : i32, i32
  }
  func.func @transform_1(%arg0: i32) -> (i32, i32) {
    %c0_i32 = arith.constant 0 : i32
    %c0_i32_0 = arith.constant 0 : i32
    %c0_i32_1 = arith.constant 0 : i32
    return %c0_i32, %c0_i32_0 : i32, i32
  }
  func.func @transform_2(%arg0: i32) -> (i32, i32) {
    %c0_i32 = arith.constant 0 : i32
    %c0_i32_0 = arith.constant 0 : i32
    %c0_i32_1 = arith.constant 0 : i32
    return %c0_i32, %c0_i32_0 : i32, i32
  }
  func.func @transform_3(%arg0: i32) -> (i32, i32) {
    %c0_i32 = arith.constant 0 : i32
    %c0_i32_0 = arith.constant 0 : i32
    %c0_i32_1 = arith.constant 0 : i32
    return %c0_i32, %c0_i32_0 : i32, i32
  }
  func.func @transform_4(%arg0: i32) -> (i32, i32) {
    %c0_i32 = arith.constant 0 : i32
    %c0_i32_0 = arith.constant 0 : i32
    %c0_i32_1 = arith.constant 0 : i32
    return %c0_i32, %c0_i32_0 : i32, i32
  }
  func.func @transform_5(%arg0: i32) -> (i32, i32) {
    %c0_i32 = arith.constant 0 : i32
    %c0_i32_0 = arith.constant 0 : i32
    return %arg0, %c0_i32 : i32, i32
  }
}

</mosaic_0001>

<llo_original>
// kernel: tpu_custom_call.1
$region0: #{tpu_custom_call.1}
  #allocation0 [shape = 'u32[]', space=smem, size = 0x4, offset = 0x4, fixed_abs, tag = 'smem constant byte address 0x4 - core index']
  #allocation1 [shape = 'u32[72,128]{1,0:T(1,128)}', space=vmem, size = 0x9000, scoped, tag = 'internal scratch']
  %s0 = inlined_call_operand.hbm [shape: f32[128,128], index: 0, kind: input, shape index: {}]
  %s1 = inlined_call_operand.hbm [shape: f32[128,128], index: 1, kind: input, shape index: {}]
  %s2 = inlined_call_operand.vmem [shape: f32[1,128], index: 2, kind: input, shape index: {}]
  %s3 = inlined_call_operand.hbm [shape: f32[128,128], index: 3, kind: input, shape index: {}]
  %s4 = inlined_call_operand.vmem [shape: f32[1,128], index: 4, kind: input, shape index: {}]
  %s5 = inlined_call_operand.hbm [shape: f32[128,128], index: 5, kind: output, shape index: {}]
  %s6 = sld [smem:[#allocation0]]
  $region42: #{tpu_custom_call.1} parent=0
    _
  %s8 = ssub.s32 1, %s6
  %s9 = scalar_select 0, %s8, %s6
  $region1: #{tpu_custom_call.1} parent=0
    #allocation2 [shape = 'u8[65536]{0}', space=vmem, size = 0x10000, scoped, tag = 'input window, operand 0, single buffered']
    #allocation3 [shape = 's32[1]{0}', space=sflag, size = 0x4, scoped, tag = 'scoped memory for tpu_custom_call.1']
    #allocation4 [shape = 's32[1]{0}', space=sflag, size = 0x4, scoped, tag = 'scoped memory for tpu_custom_call.1']
    #allocation5 [shape = 'u8[65536]{0}', space=vmem, size = 0x10000, scoped, tag = 'input window, operand 1, single buffered']
    #allocation6 [shape = 's32[1]{0}', space=sflag, size = 0x4, scoped, tag = 'scoped memory for tpu_custom_call.1']
    #allocation7 [shape = 'u8[65536]{0}', space=vmem, size = 0x10000, scoped, tag = 'input window, operand 3, single buffered']
    #allocation8 [shape = 'u8[65536]{0}', space=vmem, size = 0x10000, scoped, tag = 'output window, operand 0, single buffered']
    %10 = vsyncpa [#allocation3], 0
    %11 = vsyncpa [#allocation6], 0
    %12 = vsyncpa [#allocation4], 0
    // Predicated region
    $region2: #{tpu_custom_call.1} parent=1 // pred_check
      _
    $region3: #{tpu_custom_call.1} parent=1 // pred_check_branch
      %14 = sbr.rel (0) target = $region5
    $region4: #{tpu_custom_call.1} parent=1 // pred_region
      %16 = vsyncadd [#allocation3], 0
      %s17 = sshll.u32 %s0, 4
      %s18 = int_to_ptr.hbm [resolvable:$true] %s17
      %s19 = sshll.u32 [#allocation2], 4
      %s20 = int_to_ptr.vmem [resolvable:$true] %s19
      %25 = dma.hbm_to_vmem [thread:$0]  %s18, 2048, %s20, [#allocation3], 128, 128, 8
    $region5: #{tpu_custom_call.1} parent=1 // pred_fallthru
      _
    // Predicated region
    $region6: #{tpu_custom_call.1} parent=1 // pred_check
      _
    $region7: #{tpu_custom_call.1} parent=1 // pred_check_branch
      %27 = sbr.rel (0) target = $region9
    $region8: #{tpu_custom_call.1} parent=1 // pred_region
      %29 = vsyncadd [#allocation6], 0
      %s30 = sshll.u32 %s1, 4
      %s31 = int_to_ptr.hbm [resolvable:$true] %s30
      %s32 = sshll.u32 [#allocation5], 4
      %s33 = int_to_ptr.vmem [resolvable:$true] %s32
      %38 = dma.hbm_to_vmem [thread:$0]  %s31, 2048, %s33, [#allocation6], 128, 128, 8
    $region9: #{tpu_custom_call.1} parent=1 // pred_fallthru
      _
    // Predicated region
    $region10: #{tpu_custom_call.1} parent=1 // pred_check
      _
    $region11: #{tpu_custom_call.1} parent=1 // pred_check_branch
      %40 = sbr.rel (0) target = $region13
    $region12: #{tpu_custom_call.1} parent=1 // pred_region
      _
    $region13: #{tpu_custom_call.1} parent=1 // pred_fallthru
      _
    // Predicated region
    $region14: #{tpu_custom_call.1} parent=1 // pred_check
      _
    $region15: #{tpu_custom_call.1} parent=1 // pred_check_branch
      %42 = sbr.rel (0) target = $region17
    $region16: #{tpu_custom_call.1} parent=1 // pred_region
      %44 = vsyncadd [#allocation6], 0
      %s45 = sshll.u32 %s3, 4
      %s46 = int_to_ptr.hbm [resolvable:$true] %s45
      %s47 = sshll.u32 [#allocation7], 4
      %s48 = int_to_ptr.vmem [resolvable:$true] %s47
      %53 = dma.hbm_to_vmem [thread:$0]  %s46, 2048, %s48, [#allocation6], 128, 128, 8
    $region17: #{tpu_custom_call.1} parent=1 // pred_fallthru
      _
    // Predicated region
    $region18: #{tpu_custom_call.1} parent=1 // pred_check
      _
    $region19: #{tpu_custom_call.1} parent=1 // pred_check_branch
      %55 = sbr.rel (0) target = $region21
    $region20: #{tpu_custom_call.1} parent=1 // pred_region
      _
    $region21: #{tpu_custom_call.1} parent=1 // pred_fallthru
      _
    // Predicated region
    $region22: #{tpu_custom_call.1} parent=1 // pred_check
      _
    $region23: #{tpu_custom_call.1} parent=1 // pred_check_branch
      %57 = sbr.rel (0) target = $region25
    $region24: #{tpu_custom_call.1} parent=1 // pred_region
      %59 = dma.done [#allocation3], 2048
    $region25: #{tpu_custom_call.1} parent=1 // pred_fallthru
      _
    // Predicated region
    $region26: #{tpu_custom_call.1} parent=1 // pred_check
      _
    $region27: #{tpu_custom_call.1} parent=1 // pred_check_branch
      %61 = sbr.rel (0) target = $region29
    $region28: #{tpu_custom_call.1} parent=1 // pred_region
      %63 = dma.done [#allocation6], 2048
    $region29: #{tpu_custom_call.1} parent=1 // pred_fallthru
      _
    // Predicated region
    $region30: #{tpu_custom_call.1} parent=1 // pred_check
      _
    $region31: #{tpu_custom_call.1} parent=1 // pred_check_branch
      %65 = sbr.rel (0) target = $region33
    $region32: #{tpu_custom_call.1} parent=1 // pred_region
      %67 = dma.done [#allocation6], 2048
    $region33: #{tpu_custom_call.1} parent=1 // pred_fallthru
      _
    %v68 = vld [vmem:[#allocation2] sm:$0xff]
    %v69 = vld [vmem:[#allocation2 + $0x8] sm:$0xff]
    %v70 = vld [vmem:[#allocation2 + $0x10] sm:$0xff]
    %v71 = vld [vmem:[#allocation2 + $0x18] sm:$0xff]
    %v72 = vld [vmem:[#allocation2 + $0x20] sm:$0xff]
    %v73 = vld [vmem:[#allocation2 + $0x28] sm:$0xff]
    %v74 = vld [vmem:[#allocation2 + $0x30] sm:$0xff]
    %v75 = vld [vmem:[#allocation2 + $0x38] sm:$0xff]
    %v76 = vld [vmem:[#allocation2 + $0x40] sm:$0xff]
    %v77 = vld [vmem:[#allocation2 + $0x48] sm:$0xff]
    %v78 = vld [vmem:[#allocation2 + $0x50] sm:$0xff]
    %v79 = vld [vmem:[#allocation2 + $0x58] sm:$0xff]
    %v80 = vld [vmem:[#allocation2 + $0x60] sm:$0xff]
    %v81 = vld [vmem:[#allocation2 + $0x68] sm:$0xff]
    %v82 = vld [vmem:[#allocation2 + $0x70] sm:$0xff]
    %v83 = vld [vmem:[#allocation2 + $0x78] sm:$0xff]
    %v84 = vld [vmem:[#allocation5] sm:$0xff]
    %v85 = vld [vmem:[#allocation5 + $0x8] sm:$0xff]
    %v86 = vld [vmem:[#allocation5 + $0x10] sm:$0xff]
    %v87 = vld [vmem:[#allocation5 + $0x18] sm:$0xff]
    %v88 = vld [vmem:[#allocation5 + $0x20] sm:$0xff]
    %v89 = vld [vmem:[#allocation5 + $0x28] sm:$0xff]
    %v90 = vld [vmem:[#allocation5 + $0x30] sm:$0xff]
    %v91 = vld [vmem:[#allocation5 + $0x38] sm:$0xff]
    %v92 = vld [vmem:[#allocation5 + $0x40] sm:$0xff]
    %v93 = vld [vmem:[#allocation5 + $0x48] sm:$0xff]
    %v94 = vld [vmem:[#allocation5 + $0x50] sm:$0xff]
    %v95 = vld [vmem:[#allocation5 + $0x58] sm:$0xff]
    %v96 = vld [vmem:[#allocation5 + $0x60] sm:$0xff]
    %v97 = vld [vmem:[#allocation5 + $0x68] sm:$0xff]
    %v98 = vld [vmem:[#allocation5 + $0x70] sm:$0xff]
    %v99 = vld [vmem:[#allocation5 + $0x78] sm:$0xff]
    %v100 = vld [vmem:[%s2] sm:$0x1]
    %v102 = vperm.slane %v100, 0
    %104 = vmatpush.msra.mxu0 %v99
    %105 = vmatpush.msra.mxu0 %v98
    %106 = vmatpush.msra.mxu0 %v97
    %107 = vmatpush.msra.mxu0 %v96
    %108 = vmatpush.msra.mxu0 %v95
    %109 = vmatpush.msra.mxu0 %v94
    %110 = vmatpush.msra.mxu0 %v93
    %111 = vmatpush.msra.mxu0 %v92
    %112 = vmatpush.msra.mxu0 %v91
    %113 = vmatpush.msra.mxu0 %v90
    %114 = vmatpush.msra.mxu0 %v89
    %115 = vmatpush.msra.mxu0 %v88
    %116 = vmatpush.msra.mxu0 %v87
    %117 = vmatpush.msra.mxu0 %v86
    %118 = vmatpush.msra.mxu0 %v85
    %119 = vmatpush.msra.mxu0 %v84
    %120 = vmatmul.f32.gmra.mxu0 %v68
    %v121 = vpop.f32.mrf.mxu0
    %v122 = vadd.f32 %v102, %v121
    %123 = vmatmul.f32.gmra.mxu0 %v69
    %v124 = vpop.f32.mrf.mxu0
    %v125 = vadd.f32 %v102, %v124
    %126 = vmatmul.f32.gmra.mxu0 %v70
    %v127 = vpop.f32.mrf.mxu0
    %v128 = vadd.f32 %v102, %v127
    %129 = vmatmul.f32.gmra.mxu0 %v71
    %v130 = vpop.f32.mrf.mxu0
    %v131 = vadd.f32 %v102, %v130
    %132 = vmatmul.f32.gmra.mxu0 %v72
    %v133 = vpop.f32.mrf.mxu0
    %v134 = vadd.f32 %v102, %v133
    %135 = vmatmul.f32.gmra.mxu0 %v73
    %v136 = vpop.f32.mrf.mxu0
    %v137 = vadd.f32 %v102, %v136
    %138 = vmatmul.f32.gmra.mxu0 %v74
    %v139 = vpop.f32.mrf.mxu0
    %v140 = vadd.f32 %v102, %v139
    %141 = vmatmul.f32.gmra.mxu0 %v75
    %v142 = vpop.f32.mrf.mxu0
    %v143 = vadd.f32 %v102, %v142
    %144 = vmatmul.f32.gmra.mxu0 %v76
    %v145 = vpop.f32.mrf.mxu0
    %v146 = vadd.f32 %v102, %v145
    %147 = vmatmul.f32.gmra.mxu0 %v77
    %v148 = vpop.f32.mrf.mxu0
    %v149 = vadd.f32 %v102, %v148
    %150 = vmatmul.f32.gmra.mxu0 %v78
    %v151 = vpop.f32.mrf.mxu0
    %v152 = vadd.f32 %v102, %v151
    %153 = vmatmul.f32.gmra.mxu0 %v79
    %v154 = vpop.f32.mrf.mxu0
    %v155 = vadd.f32 %v102, %v154
    %156 = vmatmul.f32.gmra.mxu0 %v80
    %v157 = vpop.f32.mrf.mxu0
    %v158 = vadd.f32 %v102, %v157
    %159 = vmatmul.f32.gmra.mxu0 %v81
    %v160 = vpop.f32.mrf.mxu0
    %v161 = vadd.f32 %v102, %v160
    %162 = vmatmul.f32.gmra.mxu0 %v82
    %v163 = vpop.f32.mrf.mxu0
    %v164 = vadd.f32 %v102, %v163
    %165 = vmatmul.f32.gmra.mxu0 %v83
    %v166 = vpop.f32.mrf.mxu0
    %v167 = vadd.f32 %v102, %v166
    %168 = vdwg.mxu0
    %v169 = vmul.f32 %v122, %v122
    %v170 = vmul.f32 %v125, %v125
    %v171 = vmul.f32 %v128, %v128
    %v172 = vmul.f32 %v131, %v131
    %v173 = vmul.f32 %v134, %v134
    %v174 = vmul.f32 %v137, %v137
    %v175 = vmul.f32 %v140, %v140
    %v176 = vmul.f32 %v143, %v143
    %v177 = vmul.f32 %v146, %v146
    %v178 = vmul.f32 %v149, %v149
    %v179 = vmul.f32 %v152, %v152
    %v180 = vmul.f32 %v155, %v155
    %v181 = vmul.f32 %v158, %v158
    %v182 = vmul.f32 %v161, %v161
    %v183 = vmul.f32 %v164, %v164
    %v184 = vmul.f32 %v167, %v167
    %v185 = vmul.f32 %v122, %v169
    %v186 = vmul.f32 %v125, %v170
    %v187 = vmul.f32 %v128, %v171
    %v188 = vmul.f32 %v131, %v172
    %v189 = vmul.f32 %v134, %v173
    %v190 = vmul.f32 %v137, %v174
    %v191 = vmul.f32 %v140, %v175
    %v192 = vmul.f32 %v143, %v176
    %v193 = vmul.f32 %v146, %v177
    %v194 = vmul.f32 %v149, %v178
    %v195 = vmul.f32 %v152, %v179
    %v196 = vmul.f32 %v155, %v180
    %v197 = vmul.f32 %v158, %v181
    %v198 = vmul.f32 %v161, %v182
    %v199 = vmul.f32 %v164, %v183
    %v200 = vmul.f32 %v167, %v184
    %v201 = vmul.f32 %v185, 0.044715
    %v202 = vmul.f32 %v186, 0.044715
    %v203 = vmul.f32 %v187, 0.044715
    %v204 = vmul.f32 %v188, 0.044715
    %v205 = vmul.f32 %v189, 0.044715
    %v206 = vmul.f32 %v190, 0.044715
    %v207 = vmul.f32 %v191, 0.044715
    %v208 = vmul.f32 %v192, 0.044715
    %v209 = vmul.f32 %v193, 0.044715
    %v210 = vmul.f32 %v194, 0.044715
    %v211 = vmul.f32 %v195, 0.044715
    %v212 = vmul.f32 %v196, 0.044715
    %v213 = vmul.f32 %v197, 0.044715
    %v214 = vmul.f32 %v198, 0.044715
    %v215 = vmul.f32 %v199, 0.044715
    %v216 = vmul.f32 %v200, 0.044715
    %v217 = vadd.f32 %v122, %v201
    %v218 = vadd.f32 %v125, %v202
    %v219 = vadd.f32 %v128, %v203
    %v220 = vadd.f32 %v131, %v204
    %v221 = vadd.f32 %v134, %v205
    %v222 = vadd.f32 %v137, %v206
    %v223 = vadd.f32 %v140, %v207
    %v224 = vadd.f32 %v143, %v208
    %v225 = vadd.f32 %v146, %v209
    %v226 = vadd.f32 %v149, %v210
    %v227 = vadd.f32 %v152, %v211
    %v228 = vadd.f32 %v155, %v212
    %v229 = vadd.f32 %v158, %v213
    %v230 = vadd.f32 %v161, %v214
    %v231 = vadd.f32 %v164, %v215
    %v232 = vadd.f32 %v167, %v216
    %v233 = vmul.f32 %v217, 0.7978846
    %v234 = vmul.f32 %v218, 0.7978846
    %v235 = vmul.f32 %v219, 0.7978846
    %v236 = vmul.f32 %v220, 0.7978846
    %v237 = vmul.f32 %v221, 0.7978846
    %v238 = vmul.f32 %v222, 0.7978846
    %v239 = vmul.f32 %v223, 0.7978846
    %v240 = vmul.f32 %v224, 0.7978846
    %v241 = vmul.f32 %v225, 0.7978846
    %v242 = vmul.f32 %v226, 0.7978846
    %v243 = vmul.f32 %v227, 0.7978846
    %v244 = vmul.f32 %v228, 0.7978846
    %v245 = vmul.f32 %v229, 0.7978846
    %v246 = vmul.f32 %v230, 0.7978846
    %v247 = vmul.f32 %v231, 0.7978846
    %v248 = vmul.f32 %v232, 0.7978846
    %v249 = vtanh.pop %v233
    %v250 = vtanh.pop %v234
    %v251 = vtanh.pop %v235
    %v252 = vtanh.pop %v236
    %v253 = vtanh.pop %v237
    %v254 = vtanh.pop %v238
    %v255 = vtanh.pop %v239
    %v256 = vtanh.pop %v240
    %v257 = vtanh.pop %v241
    %v258 = vtanh.pop %v242
    %v259 = vtanh.pop %v243
    %v260 = vtanh.pop %v244
    %v261 = vtanh.pop %v245
    %v262 = vtanh.pop %v246
    %v263 = vtanh.pop %v247
    %v264 = vtanh.pop %v248
    %v265 = vadd.f32 %v249, 1.0
    %v266 = vadd.f32 %v250, 1.0
    %v267 = vadd.f32 %v251, 1.0
    %v268 = vadd.f32 %v252, 1.0
    %v269 = vadd.f32 %v253, 1.0
    %v270 = vadd.f32 %v254, 1.0
    %v271 = vadd.f32 %v255, 1.0
    %v272 = vadd.f32 %v256, 1.0
    %v273 = vadd.f32 %v257, 1.0
    %v274 = vadd.f32 %v258, 1.0
    %v275 = vadd.f32 %v259, 1.0
    %v276 = vadd.f32 %v260, 1.0
    %v277 = vadd.f32 %v261, 1.0
    %v278 = vadd.f32 %v262, 1.0
    %v279 = vadd.f32 %v263, 1.0
    %v280 = vadd.f32 %v264, 1.0
    %v281 = vmul.f32 %v265, 0.5
    %v282 = vmul.f32 %v266, 0.5
    %v283 = vmul.f32 %v267, 0.5
    %v284 = vmul.f32 %v268, 0.5
    %v285 = vmul.f32 %v269, 0.5
    %v286 = vmul.f32 %v270, 0.5
    %v287 = vmul.f32 %v271, 0.5
    %v288 = vmul.f32 %v272, 0.5
    %v289 = vmul.f32 %v273, 0.5
    %v290 = vmul.f32 %v274, 0.5
    %v291 = vmul.f32 %v275, 0.5
    %v292 = vmul.f32 %v276, 0.5
    %v293 = vmul.f32 %v277, 0.5
    %v294 = vmul.f32 %v278, 0.5
    %v295 = vmul.f32 %v279, 0.5
    %v296 = vmul.f32 %v280, 0.5
    %v297 = vmul.f32 %v122, %v281
    %v298 = vmul.f32 %v125, %v282
    %v299 = vmul.f32 %v128, %v283
    %v300 = vmul.f32 %v131, %v284
    %v301 = vmul.f32 %v134, %v285
    %v302 = vmul.f32 %v137, %v286
    %v303 = vmul.f32 %v140, %v287
    %v304 = vmul.f32 %v143, %v288
    %v305 = vmul.f32 %v146, %v289
    %v306 = vmul.f32 %v149, %v290
    %v307 = vmul.f32 %v152, %v291
    %v308 = vmul.f32 %v155, %v292
    %v309 = vmul.f32 %v158, %v293
    %v310 = vmul.f32 %v161, %v294
    %v311 = vmul.f32 %v164, %v295
    %v312 = vmul.f32 %v167, %v296
    %v313 = vld [vmem:[#allocation7] sm:$0xff]
    %v314 = vld [vmem:[#allocation7 + $0x8] sm:$0xff]
    %v315 = vld [vmem:[#allocation7 + $0x10] sm:$0xff]
    %v316 = vld [vmem:[#allocation7 + $0x18] sm:$0xff]
    %v317 = vld [vmem:[#allocation7 + $0x20] sm:$0xff]
    %v318 = vld [vmem:[#allocation7 + $0x28] sm:$0xff]
    %v319 = vld [vmem:[#allocation7 + $0x30] sm:$0xff]
    %v320 = vld [vmem:[#allocation7 + $0x38] sm:$0xff]
    %v321 = vld [vmem:[#allocation7 + $0x40] sm:$0xff]
    %v322 = vld [vmem:[#allocation7 + $0x48] sm:$0xff]
    %v323 = vld [vmem:[#allocation7 + $0x50] sm:$0xff]
    %v324 = vld [vmem:[#allocation7 + $0x58] sm:$0xff]
    %v325 = vld [vmem:[#allocation7 + $0x60] sm:$0xff]
    %v326 = vld [vmem:[#allocation7 + $0x68] sm:$0xff]
    %v327 = vld [vmem:[#allocation7 + $0x70] sm:$0xff]
    %v328 = vld [vmem:[#allocation7 + $0x78] sm:$0xff]
    %v329 = vld [vmem:[%s4] sm:$0x1]
    %v331 = vperm.slane %v329, 0
    %333 = vmatpush.msra.mxu0 %v328
    %334 = vmatpush.msra.mxu0 %v327
    %335 = vmatpush.msra.mxu0 %v326
    %336 = vmatpush.msra.mxu0 %v325
    %337 = vmatpush.msra.mxu0 %v324
    %338 = vmatpush.msra.mxu0 %v323
    %339 = vmatpush.msra.mxu0 %v322
    %340 = vmatpush.msra.mxu0 %v321
    %341 = vmatpush.msra.mxu0 %v320
    %342 = vmatpush.msra.mxu0 %v319
    %343 = vmatpush.msra.mxu0 %v318
    %344 = vmatpush.msra.mxu0 %v317
    %345 = vmatpush.msra.mxu0 %v316
    %346 = vmatpush.msra.mxu0 %v315
    %347 = vmatpush.msra.mxu0 %v314
    %348 = vmatpush.msra.mxu0 %v313
    %349 = vmatmul.f32.gmra.mxu0 %v297
    %v350 = vpop.f32.mrf.mxu0
    %v351 = vadd.f32 %v331, %v350
    %352 = vmatmul.f32.gmra.mxu0 %v298
    %v353 = vpop.f32.mrf.mxu0
    %v354 = vadd.f32 %v331, %v353
    %355 = vmatmul.f32.gmra.mxu0 %v299
    %v356 = vpop.f32.mrf.mxu0
    %v357 = vadd.f32 %v331, %v356
    %358 = vmatmul.f32.gmra.mxu0 %v300
    %v359 = vpop.f32.mrf.mxu0
    %v360 = vadd.f32 %v331, %v359
    %361 = vmatmul.f32.gmra.mxu0 %v301
    %v362 = vpop.f32.mrf.mxu0
    %v363 = vadd.f32 %v331, %v362
    %364 = vmatmul.f32.gmra.mxu0 %v302
    %v365 = vpop.f32.mrf.mxu0
    %v366 = vadd.f32 %v331, %v365
    %367 = vmatmul.f32.gmra.mxu0 %v303
    %v368 = vpop.f32.mrf.mxu0
    %v369 = vadd.f32 %v331, %v368
    %370 = vmatmul.f32.gmra.mxu0 %v304
    %v371 = vpop.f32.mrf.mxu0
    %v372 = vadd.f32 %v331, %v371
    %373 = vmatmul.f32.gmra.mxu0 %v305
    %v374 = vpop.f32.mrf.mxu0
    %v375 = vadd.f32 %v331, %v374
    %376 = vmatmul.f32.gmra.mxu0 %v306
    %v377 = vpop.f32.mrf.mxu0
    %v378 = vadd.f32 %v331, %v377
    %379 = vmatmul.f32.gmra.mxu0 %v307
    %v380 = vpop.f32.mrf.mxu0
    %v381 = vadd.f32 %v331, %v380
    %382 = vmatmul.f32.gmra.mxu0 %v308
    %v383 = vpop.f32.mrf.mxu0
    %v384 = vadd.f32 %v331, %v383
    %385 = vmatmul.f32.gmra.mxu0 %v309
    %v386 = vpop.f32.mrf.mxu0
    %v387 = vadd.f32 %v331, %v386
    %388 = vmatmul.f32.gmra.mxu0 %v310
    %v389 = vpop.f32.mrf.mxu0
    %v390 = vadd.f32 %v331, %v389
    %391 = vmatmul.f32.gmra.mxu0 %v311
    %v392 = vpop.f32.mrf.mxu0
    %v393 = vadd.f32 %v331, %v392
    %394 = vmatmul.f32.gmra.mxu0 %v312
    %v395 = vpop.f32.mrf.mxu0
    %v396 = vadd.f32 %v331, %v395
    %397 = vdwg.mxu0
    %398 = vst [vmem:[#allocation8] sm:$0xff] %v351
    %399 = vst [vmem:[#allocation8 + $0x8] sm:$0xff] %v354
    %400 = vst [vmem:[#allocation8 + $0x10] sm:$0xff] %v357
    %401 = vst [vmem:[#allocation8 + $0x18] sm:$0xff] %v360
    %402 = vst [vmem:[#allocation8 + $0x20] sm:$0xff] %v363
    %403 = vst [vmem:[#allocation8 + $0x28] sm:$0xff] %v366
    %404 = vst [vmem:[#allocation8 + $0x30] sm:$0xff] %v369
    %405 = vst [vmem:[#allocation8 + $0x38] sm:$0xff] %v372
    %406 = vst [vmem:[#allocation8 + $0x40] sm:$0xff] %v375
    %407 = vst [vmem:[#allocation8 + $0x48] sm:$0xff] %v378
    %408 = vst [vmem:[#allocation8 + $0x50] sm:$0xff] %v381
    %409 = vst [vmem:[#allocation8 + $0x58] sm:$0xff] %v384
    %410 = vst [vmem:[#allocation8 + $0x60] sm:$0xff] %v387
    %411 = vst [vmem:[#allocation8 + $0x68] sm:$0xff] %v390
    %412 = vst [vmem:[#allocation8 + $0x70] sm:$0xff] %v393
    %413 = vst [vmem:[#allocation8 + $0x78] sm:$0xff] %v396
    // Predicated region
    $region34: #{tpu_custom_call.1} parent=1 // pred_check
      _
    $region35: #{tpu_custom_call.1} parent=1 // pred_check_branch
      %415 = sbr.rel (0) target = $region37
    $region36: #{tpu_custom_call.1} parent=1 // pred_region
      %417 = vsyncadd [#allocation4], 0
      %s418 = sshll.u32 [#allocation8], 4
      %s419 = int_to_ptr.vmem [resolvable:$true] %s418
      %s420 = sshll.u32 %s5, 4
      %s421 = int_to_ptr.hbm [resolvable:$true] %s420
      %426 = dma.vmem_to_hbm [thread:$0]  %s419, 2048, %s421, [#allocation4], 128, 128, 8
    $region37: #{tpu_custom_call.1} parent=1 // pred_fallthru
      _
    // Predicated region
    $region38: #{tpu_custom_call.1} parent=1 // pred_check
      _
    $region39: #{tpu_custom_call.1} parent=1 // pred_check_branch
      %428 = sbr.rel (0) target = $region41
    $region40: #{tpu_custom_call.1} parent=1 // pred_region
      %430 = dma.done [#allocation4], 2048
    $region41: #{tpu_custom_call.1} parent=1 // pred_fallthru
      _
    %431 = vsyncpa [#allocation3], 1
    %432 = vsyncpa [#allocation6], 1
    %433 = vsyncpa [#allocation4], 1

</llo_original>
